<compile_context>
chip_gen: v7x
topology: tpu7x:2x2x1
jax: 0.10.0
libtpu: 0.0.40
codegen_flags: <defaults>
</compile_context>

<pallas_src>
import jax
import jax.numpy as jnp
import numpy as np
from jax.experimental import pallas as pl
from jax.experimental.pallas import tpu as pltpu


def _identity_touch_kernel(y_ref, o_ref):
    # Output aliases the input buffer, so no data movement is needed for an
    # identity.  touch() records a read+write dependency on the aliased
    # output so it is considered produced by this kernel (no vld/vst, no DMA).
    del y_ref
    pltpu.touch(o_ref)


def _identity_copy_kernel(y_ref, o_ref):
    # Fallback path: single full-block VMEM copy (lane-dense when possible).
    o_ref[...] = y_ref[...]


def _zero_dma_identity(y):
    return pl.pallas_call(
        _identity_touch_kernel,
        out_shape=jax.ShapeDtypeStruct(y.shape, y.dtype),
        # Raw HBM refs: no auto-DMA into VMEM, no writeback.
        in_specs=[pl.BlockSpec(memory_space=pl.ANY)],
        out_specs=pl.BlockSpec(memory_space=pl.ANY),
        # Output buffer == (defensively copied, non-donated) input buffer.
        input_output_aliases={0: 0},
        compiler_params=pltpu.CompilerParams(has_side_effects=True),
        cost_estimate=pl.CostEstimate(flops=0, transcendentals=0, bytes_accessed=0),
    )(y)


def _vmem_copy_identity(y):
    # Defensive fallback only (previously validated on TPU). Gridless whole-
    # array VMEM block — fine for small harness tensors; large tensors should
    # be tiled, but the primary zero-DMA path above already covers any size.
    orig_shape = y.shape
    n = y.size
    # Lane-dense slab whenever n % 128 == 0 (full-array blocks are exempt from
    # the (8,128) divisibility rule, so no extra sublane condition is needed).
    flat = y.reshape(n // 128, 128) if n % 128 == 0 else y.reshape(1, n)
    out = pl.pallas_call(
        _identity_copy_kernel,
        out_shape=jax.ShapeDtypeStruct(flat.shape, flat.dtype),
        in_specs=[pl.BlockSpec(memory_space=pltpu.MemorySpace.VMEM)],
        out_specs=pl.BlockSpec(memory_space=pltpu.MemorySpace.VMEM),
        cost_estimate=pl.CostEstimate(
            flops=0,
            transcendentals=0,
            bytes_accessed=2 * flat.size * flat.dtype.itemsize,
        ),
    )(flat)
    return out.reshape(orig_shape)


def g_identity_forward(y):
    """Pallas implementation of g_identity.forward (a pure identity).

    The module's nn.Linear(1, 1, bias=False) parameter is never used by the
    reference forward, so it is deliberately excluded from the traced
    signature (no H2D transfer, no 1x1 MXU push for a mathematically absent
    op).
    """
    try:
        return _zero_dma_identity(y)
    except Exception:
        # Lowering/compile fallback only; functional result is identical.
        return _vmem_copy_identity(y)


if __name__ == "__main__":
    key = jax.random.PRNGKey(0)

    # Small deterministic example input, matching the test harness shape.
    x = jax.random.normal(key, (2, 4, 16, 16), dtype=jnp.float32)

    # Snapshot the expected result on host before the (aliasing) call.
    x_host = np.asarray(x)

    out = jax.block_until_ready(g_identity_forward(x))

    assert out.shape == x_host.shape and out.dtype == x_host.dtype
    assert np.array_equal(np.asarray(out), x_host)
    print("KERNEL_OK")
</pallas_src>

<mosaic_0001>
module attributes {stable_mosaic.version = 11 : i64} {
  func.func @_identity_touch_kernel(%arg0: memref<2x4x16x16xf32, #tpu.memory_space<any>>, %arg1: memref<2x4x16x16xf32, #tpu.memory_space<any>>) attributes {dimension_semantics = [], scalar_prefetch = 0 : i64, scratch_operands = 0 : i64, tpu.core_type = #tpu.core_type<tc>} {
    return
  }
}

module attributes {stable_mosaic.version = 11 : i64} {
  func.func @_identity_copy_kernel(%arg0: memref<16x128xf32, #tpu.memory_space<vmem>>, %arg1: memref<16x128xf32, #tpu.memory_space<vmem>>) attributes {dimension_semantics = [], scalar_prefetch = 0 : i64, scratch_operands = 0 : i64, tpu.core_type = #tpu.core_type<tc>} {
    %c0 = arith.constant 0 : index
    %c0_0 = arith.constant 0 : index
    %0 = vector.load %arg0[%c0, %c0_0] : memref<16x128xf32, #tpu.memory_space<vmem>>, vector<16x128xf32>
    %c0_1 = arith.constant 0 : index
    %c0_2 = arith.constant 0 : index
    %1 = vector.load %arg1[%c0_1, %c0_2] : memref<16x128xf32, #tpu.memory_space<vmem>>, vector<16x128xf32>
    tpu.vector_store %arg1[%c0_1, %c0_2], %0 {strides = array<i32>} : memref<16x128xf32, #tpu.memory_space<vmem>>, vector<16x128xf32>,
    return
  }
}

</mosaic_0001>

<llo_original>
// kernel: tpu_custom_call.1
$region0: #{tpu_custom_call.1}
  #allocation0 [shape = 'u32[]', space=smem, size = 0x4, offset = 0x4, fixed_abs, tag = 'smem constant byte address 0x4 - core index']
  #allocation1 [shape = 'u32[144,128]{1,0:T(1,128)}', space=vmem, size = 0x12000, scoped, tag = 'internal scratch']
  %s0 = inlined_call_operand.hbm [shape: f32[2,4,16,16], index: 0, kind: input, shape index: {}, may-alias: {0,1}]
  %s1 = inlined_call_operand.hbm [shape: f32[2,4,16,16], index: 1, kind: output, shape index: {}, may-alias: {0,1}]
  %s2 = sld [smem:[#allocation0]]
  $region2: #{tpu_custom_call.1} parent=0
    _
  %s4 = ssub.s32 1, %s2
  %s5 = scalar_select 0, %s4, %s2

// kernel: tpu_custom_call.1
$region0: #{tpu_custom_call.1}
  #allocation0 [shape = 'u32[]', space=smem, size = 0x4, offset = 0x4, fixed_abs, tag = 'smem constant byte address 0x4 - core index']
  #allocation1 [shape = 'u32[144,128]{1,0:T(1,128)}', space=vmem, size = 0x12000, scoped, tag = 'internal scratch']
  %s0 = inlined_call_operand.hbm [shape: f32[16,128], index: 0, kind: input, shape index: {}]
  %s1 = inlined_call_operand.hbm [shape: f32[16,128], index: 1, kind: output, shape index: {}]
  %s2 = sld [smem:[#allocation0]]
  $region18: #{tpu_custom_call.1} parent=0
    _
  %s4 = ssub.s32 1, %s2
  %s5 = scalar_select 0, %s4, %s2
  $region1: #{tpu_custom_call.1} parent=0
    #allocation2 [shape = 'u8[8192]{0}', space=vmem, size = 0x2000, scoped, tag = 'input window, operand 0, single buffered']
    #allocation3 [shape = 's32[1]{0}', space=sflag, size = 0x4, scoped, tag = 'scoped memory for tpu_custom_call.1']
    #allocation4 [shape = 's32[1]{0}', space=sflag, size = 0x4, scoped, tag = 'scoped memory for tpu_custom_call.1']
    #allocation5 [shape = 'u8[8192]{0}', space=vmem, size = 0x2000, scoped, tag = 'output window, operand 0, single buffered']
    %6 = vsyncpa [#allocation3], 0
    %7 = vsyncpa [#allocation4], 0
    // Predicated region
    $region2: #{tpu_custom_call.1} parent=1 // pred_check
      _
    $region3: #{tpu_custom_call.1} parent=1 // pred_check_branch
      %9 = sbr.rel (0) target = $region5
    $region4: #{tpu_custom_call.1} parent=1 // pred_region
      %s11 = ssub.s32 256, 256
      %12 = vsyncadd [#allocation3], %s11
      %s13 = sshll.u32 [#allocation2], 4
      %s14 = int_to_ptr.vmem [resolvable:$true] %s13
      %19 = dma.hbm_to_vmem [thread:$0]  %s0, 256, %s14, [#allocation3], 128, 128, 8
    $region5: #{tpu_custom_call.1} parent=1 // pred_fallthru
      _
    // Predicated region
    $region6: #{tpu_custom_call.1} parent=1 // pred_check
      _
    $region7: #{tpu_custom_call.1} parent=1 // pred_check_branch
      %21 = sbr.rel (0) target = $region9
    $region8: #{tpu_custom_call.1} parent=1 // pred_region
      %22 = dma.done [#allocation3], 256
    $region9: #{tpu_custom_call.1} parent=1 // pred_fallthru
      _
    %v23 = vld [vmem:[#allocation2] sm:$0xff]
    %v24 = vld [vmem:[#allocation2 + $0x8] sm:$0xff]
    %25 = vst [vmem:[#allocation5] sm:$0xff] %v23
    %26 = vst [vmem:[#allocation5 + $0x8] sm:$0xff] %v24
    // Predicated region
    $region10: #{tpu_custom_call.1} parent=1 // pred_check
      _
    $region11: #{tpu_custom_call.1} parent=1 // pred_check_branch
      %28 = sbr.rel (0) target = $region13
    $region12: #{tpu_custom_call.1} parent=1 // pred_region
      %s30 = ssub.s32 256, 256
      %31 = vsyncadd [#allocation4], %s30
      %s32 = sshll.u32 [#allocation5], 4
      %s33 = int_to_ptr.vmem [resolvable:$true] %s32
      %38 = dma.vmem_to_hbm [thread:$0]  %s33, 256, %s1, [#allocation4], 128, 128, 8
    $region13: #{tpu_custom_call.1} parent=1 // pred_fallthru
      _
    // Predicated region
    $region14: #{tpu_custom_call.1} parent=1 // pred_check
      _
    $region15: #{tpu_custom_call.1} parent=1 // pred_check_branch
      %40 = sbr.rel (0) target = $region17
    $region16: #{tpu_custom_call.1} parent=1 // pred_region
      %41 = dma.done [#allocation4], 256
    $region17: #{tpu_custom_call.1} parent=1 // pred_fallthru
      _
    %42 = vsyncpa [#allocation3], 1
    %43 = vsyncpa [#allocation4], 1

</llo_original>
